<compile_context>
chip_gen: v7x
topology: tpu7x:2x2x1
jax: 0.10.0
libtpu: 0.0.40
codegen_flags: <defaults>
</compile_context>

<pallas_src>
import jax
import jax.numpy as jnp
from jax.experimental import pallas as pl
from jax.experimental.pallas import tpu as pltpu

D_IN, D_HID, D_OUT = 512, 128, 3
D_PAD = 128          # MXU-friendly lane width for the fused weight (cols 3..127 are zeros)
BLOCK_B = 2048       # batch tile: 2x 4 MiB x-buffers + ~2 MiB out + ~0.5 MiB weights ~= 10.5 MiB
                     # -> fits v5e's 16 MiB default scoped VMEM (and v6e/v7x comfortably).


def _round_up(n: int, m: int) -> int:
    return ((n + m - 1) // m) * m


def _fused_linear_kernel(x_ref, wf_ref, bf_ref, o_ref):
    # (tb, 512) @ (512, 128) on the MXU, f32 accumulate; bias broadcasts over rows.
    acc = jnp.dot(x_ref[...], wf_ref[...], preferred_element_type=jnp.float32)
    # Store only the 3 real output columns: narrow, unpadded HBM writeback.
    o_ref[...] = (acc + bf_ref[...])[:, :D_OUT].astype(o_ref.dtype)


def fuse_params(w1, b1, w2, b2):
    """Exact algebraic fusion of projector+classifier (valid: no activation in between).
    Call once and reuse the result for every forward call (hot path stays GEMM-only)."""
    w_f = jnp.dot(w1, w2, preferred_element_type=jnp.float32)         # (512, 3)
    b_f = jnp.dot(b1, w2, preferred_element_type=jnp.float32) + b2    # (1, 3)
    w_pad = jnp.zeros((D_IN, D_PAD), jnp.float32).at[:, :D_OUT].set(w_f)
    b_pad = jnp.zeros((1, D_PAD), jnp.float32).at[:, :D_OUT].set(b_f)
    return w_pad, b_pad


@jax.jit
def global_model_forward(x, w_pad, b_pad):
    """x: (B, 512) f32, fused/padded params -> (B, 3) f32 == classifier(projector(x))."""
    B = x.shape[0]
    # Batch tile: as large as possible (amortizes per-step overhead) but capped so the
    # grid keeps >= 2 steps when there is enough work (megacore on v7x, DMA overlap).
    # Un-aligned B is handled by Pallas partial boundary blocks: OOB input rows of the
    # last tile feed garbage into independent rows whose outputs are never written back.
    tb = max(8, min(BLOCK_B, _round_up(pl.cdiv(B, 2), 8)))
    grid = pl.cdiv(B, tb)

    return pl.pallas_call(
        _fused_linear_kernel,
        out_shape=jax.ShapeDtypeStruct((B, D_OUT), jnp.float32),
        grid_spec=pltpu.PrefetchScalarGridSpec(
            num_scalar_prefetch=0,
            grid=(grid,),
            in_specs=[
                pl.BlockSpec((tb, D_IN), lambda i: (i, 0)),         # x: streamed batch tiles
                pl.BlockSpec((D_IN, D_PAD), lambda i: (0, 0)),      # fused W: VMEM-resident
                pl.BlockSpec((1, D_PAD), lambda i: (0, 0)),         # fused b: VMEM-resident
            ],
            out_specs=pl.BlockSpec((tb, D_OUT), lambda i: (i, 0)),  # narrow (B, 3) writeback
        ),
        compiler_params=pltpu.CompilerParams(
            # Batch tiles are independent -> shard grid across both TCs on v7x; no-op on
            # v5e/v6e single-TC chips.
            dimension_semantics=("parallel",),
        ),
    )(x, w_pad, b_pad)


def init_params(key):
    """PyTorch nn.Linear default init U(-1/sqrt(fan_in), 1/sqrt(fan_in)); weights stored
    as (in, out) so the forward is a plain x @ W + b."""
    k1, k2, k3, k4 = jax.random.split(key, 4)
    lim1 = 1.0 / jnp.sqrt(jnp.float32(D_IN))
    lim2 = 1.0 / jnp.sqrt(jnp.float32(D_HID))
    w1 = jax.random.uniform(k1, (D_IN, D_HID), jnp.float32, -lim1, lim1)
    b1 = jax.random.uniform(k2, (1, D_HID), jnp.float32, -lim1, lim1)
    w2 = jax.random.uniform(k3, (D_HID, D_OUT), jnp.float32, -lim2, lim2)
    b2 = jax.random.uniform(k4, (1, D_OUT), jnp.float32, -lim2, lim2)
    return w1, b1, w2, b2


if __name__ == "__main__":
    key = jax.random.PRNGKey(0)
    kx, kx2, kp = jax.random.split(key, 3)
    w1, b1, w2, b2 = init_params(kp)
    w_pad, b_pad = fuse_params(w1, b1, w2, b2)   # fused once, reused for all calls

    def ref(x):
        return (x @ w1 + b1) @ w2 + b2           # un-fused two-Linear reference

    # Small batch (exercises the sublane-padded partial block: 4 valid rows in an 8-row tile).
    x_small = jax.random.normal(kx, (4, D_IN), jnp.float32)
    out_small = jax.block_until_ready(global_model_forward(x_small, w_pad, b_pad))
    assert out_small.shape == (4, D_OUT)
    assert jnp.allclose(out_small, ref(x_small), atol=1e-4, rtol=1e-4)

    # Batch not divisible by the tile (exercises the multi-step grid + partial last block,
    # with no wrapper-side padding pass over x).
    x_odd = jax.random.normal(kx2, (300, D_IN), jnp.float32)
    out_odd = jax.block_until_ready(global_model_forward(x_odd, w_pad, b_pad))
    assert out_odd.shape == (300, D_OUT)
    assert jnp.allclose(out_odd, ref(x_odd), atol=1e-4, rtol=1e-4)

    print("KERNEL_OK")
</pallas_src>

<mosaic_0001>
module attributes {stable_mosaic.version = 11 : i64} {
  func.func @_fused_linear_kernel(%arg0: i32, %arg1: memref<8x512xf32, #tpu.memory_space<vmem>>, %arg2: memref<512x128xf32, #tpu.memory_space<vmem>>, %arg3: memref<1x128xf32, #tpu.memory_space<vmem>>, %arg4: memref<8x3xf32, #tpu.memory_space<vmem>>) attributes {dimension_semantics = [#tpu.dimension_semantics<parallel>], iteration_bounds = array<i64: 1>, scalar_prefetch = 0 : i64, scratch_operands = 0 : i64, tpu.core_type = #tpu.core_type<tc>, window_params = [{transform_indices = @transform_0, window_bounds = array<i64: 8, 512>}, {pipeline_mode = #tpu.pipeline_mode<synchronous>, transform_indices = @transform_1, window_bounds = array<i64: 512, 128>}, {pipeline_mode = #tpu.pipeline_mode<synchronous>, transform_indices = @transform_2, window_bounds = array<i64: 1, 128>}, {transform_indices = @transform_3, window_bounds = array<i64: 8, 3>}]} {
    %c0 = arith.constant 0 : index
    %c0_0 = arith.constant 0 : index
    %0 = vector.load %arg1[%c0, %c0_0] : memref<8x512xf32, #tpu.memory_space<vmem>>, vector<8x512xf32>
    %c0_1 = arith.constant 0 : index
    %c0_2 = arith.constant 0 : index
    %1 = vector.load %arg2[%c0_1, %c0_2] : memref<512x128xf32, #tpu.memory_space<vmem>>, vector<512x128xf32>
    %cst = arith.constant dense<0.000000e+00> : vector<8x128xf32>
    %2 = tpu.matmul %0, %1, %cst {dimension_numbers = #tpu.dot_dimension_numbers<[1], [0], [0], [1], [0, 0, 1, 1], [], []>} : vector<8x512xf32>, vector<512x128xf32>, vector<8x128xf32> -> vector<8x128xf32>
    %c0_3 = arith.constant 0 : index
    %c0_4 = arith.constant 0 : index
    %3 = vector.load %arg3[%c0_3, %c0_4] : memref<1x128xf32, #tpu.memory_space<vmem>>, vector<1x128xf32>
    %4 = vector.broadcast %3 : vector<1x128xf32> to vector<8x128xf32>
    %5 = arith.addf %2, %4 : vector<8x128xf32>
    %6 = vector.extract_strided_slice %5 {offsets = [0, 0], sizes = [8, 3], strides = [1, 1]} : vector<8x128xf32> to vector<8x3xf32>
    %c0_5 = arith.constant 0 : index
    %c0_6 = arith.constant 0 : index
    %7 = vector.load %arg4[%c0_5, %c0_6] : memref<8x3xf32, #tpu.memory_space<vmem>>, vector<8x3xf32>
    tpu.vector_store %arg4[%c0_5, %c0_6], %6 {strides = array<i32>} : memref<8x3xf32, #tpu.memory_space<vmem>>, vector<8x3xf32>,
    return
  }
  func.func @transform_0(%arg0: i32) -> (i32, i32) {
    %c0_i32 = arith.constant 0 : i32
    %c0_i32_0 = arith.constant 0 : i32
    return %arg0, %c0_i32 : i32, i32
  }
  func.func @transform_1(%arg0: i32) -> (i32, i32) {
    %c0_i32 = arith.constant 0 : i32
    %c0_i32_0 = arith.constant 0 : i32
    %c0_i32_1 = arith.constant 0 : i32
    return %c0_i32, %c0_i32_0 : i32, i32
  }
  func.func @transform_2(%arg0: i32) -> (i32, i32) {
    %c0_i32 = arith.constant 0 : i32
    %c0_i32_0 = arith.constant 0 : i32
    %c0_i32_1 = arith.constant 0 : i32
    return %c0_i32, %c0_i32_0 : i32, i32
  }
  func.func @transform_3(%arg0: i32) -> (i32, i32) {
    %c0_i32 = arith.constant 0 : i32
    %c0_i32_0 = arith.constant 0 : i32
    return %arg0, %c0_i32 : i32, i32
  }
}

</mosaic_0001>

<llo_original>
// kernel: global_model_forward.1
$region0: #{global_model_forward.1}
  #allocation0 [shape = 'u32[]', space=smem, size = 0x4, offset = 0x4, fixed_abs, tag = 'smem constant byte address 0x4 - core index']
  #allocation1 [shape = 'u32[144,128]{1,0:T(1,128)}', space=vmem, size = 0x12000, scoped, tag = 'internal scratch']
  %s0 = inlined_call_operand.hbm [shape: f32[4,512], index: 0, kind: input, shape index: {}]
  %s1 = inlined_call_operand.hbm [shape: f32[512,128], index: 1, kind: input, shape index: {}]
  %s2 = inlined_call_operand.vmem [shape: f32[1,128], index: 2, kind: input, shape index: {}]
  %s3 = inlined_call_operand.hbm [shape: f32[4,3], index: 3, kind: output, shape index: {}]
  %s4 = sld [smem:[#allocation0]]
  $region30: #{global_model_forward.1} parent=0
    _
  %s6 = ssub.s32 1, %s4
  %s7 = scalar_select 0, %s6, %s4
  $region1: #{global_model_forward.1} parent=0
    #allocation2 [shape = 'u8[16384]{0}', space=vmem, size = 0x4000, scoped, tag = 'input window, operand 0, single buffered']
    #allocation3 [shape = 's32[1]{0}', space=sflag, size = 0x4, scoped, tag = 'scoped memory for global_model_forward.1']
    #allocation4 [shape = 's32[1]{0}', space=sflag, size = 0x4, scoped, tag = 'scoped memory for global_model_forward.1']
    #allocation5 [shape = 'u8[262144]{0}', space=vmem, size = 0x40000, scoped, tag = 'input window, operand 1, single buffered']
    #allocation6 [shape = 's32[1]{0}', space=sflag, size = 0x4, scoped, tag = 'scoped memory for global_model_forward.1']
    #allocation7 [shape = 'u8[4096]{0}', space=vmem, size = 0x1000, scoped, tag = 'output window, operand 0, single buffered']
    %8 = vsyncpa [#allocation3], 0
    %9 = vsyncpa [#allocation6], 0
    %10 = vsyncpa [#allocation4], 0
    // Predicated region
    $region2: #{global_model_forward.1} parent=1 // pred_check
      _
    $region3: #{global_model_forward.1} parent=1 // pred_check_branch
      %12 = sbr.rel (0) target = $region5
    $region4: #{global_model_forward.1} parent=1 // pred_region
      %s14 = ssub.s32 512, 256
      %15 = vsyncadd [#allocation3], %s14
      %s16 = sshll.u32 [#allocation2], 4
      %s17 = int_to_ptr.vmem [resolvable:$true] %s16
      %22 = dma.hbm_to_vmem [thread:$0]  %s0, 256, %s17, [#allocation3], 256, 256, 16
    $region5: #{global_model_forward.1} parent=1 // pred_fallthru
      _
    // Predicated region
    $region6: #{global_model_forward.1} parent=1 // pred_check
      _
    $region7: #{global_model_forward.1} parent=1 // pred_check_branch
      %24 = sbr.rel (0) target = $region9
    $region8: #{global_model_forward.1} parent=1 // pred_region
      %s26 = ssub.s32 8192, 8192
      %27 = vsyncadd [#allocation6], %s26
      %s28 = sshll.u32 [#allocation5], 4
      %s29 = int_to_ptr.vmem [resolvable:$true] %s28
      %34 = dma.hbm_to_vmem [thread:$0]  %s1, 8192, %s29, [#allocation6], 128, 128, 8
    $region9: #{global_model_forward.1} parent=1 // pred_fallthru
      _
    // Predicated region
    $region10: #{global_model_forward.1} parent=1 // pred_check
      _
    $region11: #{global_model_forward.1} parent=1 // pred_check_branch
      %36 = sbr.rel (0) target = $region13
    $region12: #{global_model_forward.1} parent=1 // pred_region
      _
    $region13: #{global_model_forward.1} parent=1 // pred_fallthru
      _
    // Predicated region
    $region14: #{global_model_forward.1} parent=1 // pred_check
      _
    $region15: #{global_model_forward.1} parent=1 // pred_check_branch
      %38 = sbr.rel (0) target = $region17
    $region16: #{global_model_forward.1} parent=1 // pred_region
      %39 = dma.done [#allocation3], 512
    $region17: #{global_model_forward.1} parent=1 // pred_fallthru
      _
    // Predicated region
    $region18: #{global_model_forward.1} parent=1 // pred_check
      _
    $region19: #{global_model_forward.1} parent=1 // pred_check_branch
      %41 = sbr.rel (0) target = $region21
    $region20: #{global_model_forward.1} parent=1 // pred_region
      %42 = dma.done [#allocation6], 8192
    $region21: #{global_model_forward.1} parent=1 // pred_fallthru
      _
    %v43 = vld [vmem:[#allocation2] sm:$0xff]
    %v44 = vld [vmem:[#allocation2 + $0x8] sm:$0xff]
    %v45 = vld [vmem:[#allocation2 + $0x10] sm:$0xff]
    %v46 = vld [vmem:[#allocation2 + $0x18] sm:$0xff]
    %v47 = vld [vmem:[#allocation5] sm:$0xff]
    %v48 = vld [vmem:[#allocation5 + $0x8] sm:$0xff]
    %v49 = vld [vmem:[#allocation5 + $0x10] sm:$0xff]
    %v50 = vld [vmem:[#allocation5 + $0x18] sm:$0xff]
    %v51 = vld [vmem:[#allocation5 + $0x20] sm:$0xff]
    %v52 = vld [vmem:[#allocation5 + $0x28] sm:$0xff]
    %v53 = vld [vmem:[#allocation5 + $0x30] sm:$0xff]
    %v54 = vld [vmem:[#allocation5 + $0x38] sm:$0xff]
    %v55 = vld [vmem:[#allocation5 + $0x40] sm:$0xff]
    %v56 = vld [vmem:[#allocation5 + $0x48] sm:$0xff]
    %v57 = vld [vmem:[#allocation5 + $0x50] sm:$0xff]
    %v58 = vld [vmem:[#allocation5 + $0x58] sm:$0xff]
    %v59 = vld [vmem:[#allocation5 + $0x60] sm:$0xff]
    %v60 = vld [vmem:[#allocation5 + $0x68] sm:$0xff]
    %v61 = vld [vmem:[#allocation5 + $0x70] sm:$0xff]
    %v62 = vld [vmem:[#allocation5 + $0x78] sm:$0xff]
    %v63 = vld [vmem:[#allocation5 + $0x80] sm:$0xff]
    %v64 = vld [vmem:[#allocation5 + $0x88] sm:$0xff]
    %v65 = vld [vmem:[#allocation5 + $0x90] sm:$0xff]
    %v66 = vld [vmem:[#allocation5 + $0x98] sm:$0xff]
    %v67 = vld [vmem:[#allocation5 + $0xa0] sm:$0xff]
    %v68 = vld [vmem:[#allocation5 + $0xa8] sm:$0xff]
    %v69 = vld [vmem:[#allocation5 + $0xb0] sm:$0xff]
    %v70 = vld [vmem:[#allocation5 + $0xb8] sm:$0xff]
    %v71 = vld [vmem:[#allocation5 + $0xc0] sm:$0xff]
    %v72 = vld [vmem:[#allocation5 + $0xc8] sm:$0xff]
    %v73 = vld [vmem:[#allocation5 + $0xd0] sm:$0xff]
    %v74 = vld [vmem:[#allocation5 + $0xd8] sm:$0xff]
    %v75 = vld [vmem:[#allocation5 + $0xe0] sm:$0xff]
    %v76 = vld [vmem:[#allocation5 + $0xe8] sm:$0xff]
    %v77 = vld [vmem:[#allocation5 + $0xf0] sm:$0xff]
    %v78 = vld [vmem:[#allocation5 + $0xf8] sm:$0xff]
    %v79 = vld [vmem:[#allocation5 + $0x100] sm:$0xff]
    %v80 = vld [vmem:[#allocation5 + $0x108] sm:$0xff]
    %v81 = vld [vmem:[#allocation5 + $0x110] sm:$0xff]
    %v82 = vld [vmem:[#allocation5 + $0x118] sm:$0xff]
    %v83 = vld [vmem:[#allocation5 + $0x120] sm:$0xff]
    %v84 = vld [vmem:[#allocation5 + $0x128] sm:$0xff]
    %v85 = vld [vmem:[#allocation5 + $0x130] sm:$0xff]
    %v86 = vld [vmem:[#allocation5 + $0x138] sm:$0xff]
    %v87 = vld [vmem:[#allocation5 + $0x140] sm:$0xff]
    %v88 = vld [vmem:[#allocation5 + $0x148] sm:$0xff]
    %v89 = vld [vmem:[#allocation5 + $0x150] sm:$0xff]
    %v90 = vld [vmem:[#allocation5 + $0x158] sm:$0xff]
    %v91 = vld [vmem:[#allocation5 + $0x160] sm:$0xff]
    %v92 = vld [vmem:[#allocation5 + $0x168] sm:$0xff]
    %v93 = vld [vmem:[#allocation5 + $0x170] sm:$0xff]
    %v94 = vld [vmem:[#allocation5 + $0x178] sm:$0xff]
    %v95 = vld [vmem:[#allocation5 + $0x180] sm:$0xff]
    %v96 = vld [vmem:[#allocation5 + $0x188] sm:$0xff]
    %v97 = vld [vmem:[#allocation5 + $0x190] sm:$0xff]
    %v98 = vld [vmem:[#allocation5 + $0x198] sm:$0xff]
    %v99 = vld [vmem:[#allocation5 + $0x1a0] sm:$0xff]
    %v100 = vld [vmem:[#allocation5 + $0x1a8] sm:$0xff]
    %v101 = vld [vmem:[#allocation5 + $0x1b0] sm:$0xff]
    %v102 = vld [vmem:[#allocation5 + $0x1b8] sm:$0xff]
    %v103 = vld [vmem:[#allocation5 + $0x1c0] sm:$0xff]
    %v104 = vld [vmem:[#allocation5 + $0x1c8] sm:$0xff]
    %v105 = vld [vmem:[#allocation5 + $0x1d0] sm:$0xff]
    %v106 = vld [vmem:[#allocation5 + $0x1d8] sm:$0xff]
    %v107 = vld [vmem:[#allocation5 + $0x1e0] sm:$0xff]
    %v108 = vld [vmem:[#allocation5 + $0x1e8] sm:$0xff]
    %v109 = vld [vmem:[#allocation5 + $0x1f0] sm:$0xff]
    %v110 = vld [vmem:[#allocation5 + $0x1f8] sm:$0xff]
    %v111 = vld [vmem:[%s2] sm:$0x1]
    %v113 = vlaneseq
    %v114 = vshrl.u32 %v113, 7
    %v115 = vsub.s32 0, %v114
    %v116 = vrot.slane %v111, %v115
    %v122 = vcombine.low %v43, %v45
    %v123 = vcombine.high %v43, %v45
    %v124 = vcombine.low %v44, %v46
    %v125 = vcombine.high %v44, %v46
    %130 = vmatprep.subr.mxu0 0.0
    %131 = vmatpush1.msra.mxu0 %v47
    %132 = vmatprep.subr.mxu0 0.0
    %133 = vmatpush1.msra.mxu0 %v48
    %134 = vmatprep.subr.mxu0 0.0
    %135 = vmatpush1.msra.mxu0 %v49
    %136 = vmatprep.subr.mxu0 0.0
    %137 = vmatpush1.msra.mxu0 %v50
    %138 = vmatprep.subr.mxu0 0.0
    %139 = vmatpush1.msra.mxu0 %v51
    %140 = vmatprep.subr.mxu0 0.0
    %141 = vmatpush1.msra.mxu0 %v52
    %142 = vmatprep.subr.mxu0 0.0
    %143 = vmatpush1.msra.mxu0 %v53
    %144 = vmatprep.subr.mxu0 0.0
    %145 = vmatpush1.msra.mxu0 %v54
    %146 = vmatprep.subr.mxu0 0.0
    %147 = vmatpush1.msra.mxu0 %v55
    %148 = vmatprep.subr.mxu0 0.0
    %149 = vmatpush1.msra.mxu0 %v56
    %150 = vmatprep.subr.mxu0 0.0
    %151 = vmatpush1.msra.mxu0 %v57
    %152 = vmatprep.subr.mxu0 0.0
    %153 = vmatpush1.msra.mxu0 %v58
    %154 = vmatprep.subr.mxu0 0.0
    %155 = vmatpush1.msra.mxu0 %v59
    %156 = vmatprep.subr.mxu0 0.0
    %157 = vmatpush1.msra.mxu0 %v60
    %158 = vmatprep.subr.mxu0 0.0
    %159 = vmatpush1.msra.mxu0 %v61
    %160 = vmatprep.subr.mxu0 0.0
    %161 = vmatpush1.msra.mxu0 %v62
    %162 = vmatprep.subr.mxu0 0.0
    %163 = vmatpush1.msra.mxu0 %v63
    %164 = vmatprep.subr.mxu0 0.0
    %165 = vmatpush1.msra.mxu0 %v64
    %166 = vmatprep.subr.mxu0 0.0
    %167 = vmatpush1.msra.mxu0 %v65
    %168 = vmatprep.subr.mxu0 0.0
    %169 = vmatpush1.msra.mxu0 %v66
    %170 = vmatprep.subr.mxu0 0.0
    %171 = vmatpush1.msra.mxu0 %v67
    %172 = vmatprep.subr.mxu0 0.0
    %173 = vmatpush1.msra.mxu0 %v68
    %174 = vmatprep.subr.mxu0 0.0
    %175 = vmatpush1.msra.mxu0 %v69
    %176 = vmatprep.subr.mxu0 0.0
    %177 = vmatpush1.msra.mxu0 %v70
    %178 = vmatprep.subr.mxu0 0.0
    %179 = vmatpush1.msra.mxu0 %v71
    %180 = vmatprep.subr.mxu0 0.0
    %181 = vmatpush1.msra.mxu0 %v72
    %182 = vmatprep.subr.mxu0 0.0
    %183 = vmatpush1.msra.mxu0 %v73
    %184 = vmatprep.subr.mxu0 0.0
    %185 = vmatpush1.msra.mxu0 %v74
    %186 = vmatprep.subr.mxu0 0.0
    %187 = vmatpush1.msra.mxu0 %v75
    %188 = vmatprep.subr.mxu0 0.0
    %189 = vmatpush1.msra.mxu0 %v76
    %190 = vmatprep.subr.mxu0 0.0
    %191 = vmatpush1.msra.mxu0 %v77
    %192 = vmatprep.subr.mxu0 0.0
    %193 = vmatpush1.msra.mxu0 %v78
    %194 = vmatprep.mubr.f32.mxu0 %v123
    %195 = vmatmul.mubr.f32.gmra.mrb[0].mxu0 %v122
    %v196 = vpop.f32.mrb[0].mxu0
    %v197 = vadd.f32 %v116, %v196
    %v198 = vpop.f32.mrb[0].mxu0
    %199 = vdwg.mxu0
    %200 = vmatprep.subr.mxu0 0.0
    %201 = vmatpush1.msra.mxu0 %v79
    %202 = vmatprep.subr.mxu0 0.0
    %203 = vmatpush1.msra.mxu0 %v80
    %204 = vmatprep.subr.mxu0 0.0
    %205 = vmatpush1.msra.mxu0 %v81
    %206 = vmatprep.subr.mxu0 0.0
    %207 = vmatpush1.msra.mxu0 %v82
    %208 = vmatprep.subr.mxu0 0.0
    %209 = vmatpush1.msra.mxu0 %v83
    %210 = vmatprep.subr.mxu0 0.0
    %211 = vmatpush1.msra.mxu0 %v84
    %212 = vmatprep.subr.mxu0 0.0
    %213 = vmatpush1.msra.mxu0 %v85
    %214 = vmatprep.subr.mxu0 0.0
    %215 = vmatpush1.msra.mxu0 %v86
    %216 = vmatprep.subr.mxu0 0.0
    %217 = vmatpush1.msra.mxu0 %v87
    %218 = vmatprep.subr.mxu0 0.0
    %219 = vmatpush1.msra.mxu0 %v88
    %220 = vmatprep.subr.mxu0 0.0
    %221 = vmatpush1.msra.mxu0 %v89
    %222 = vmatprep.subr.mxu0 0.0
    %223 = vmatpush1.msra.mxu0 %v90
    %224 = vmatprep.subr.mxu0 0.0
    %225 = vmatpush1.msra.mxu0 %v91
    %226 = vmatprep.subr.mxu0 0.0
    %227 = vmatpush1.msra.mxu0 %v92
    %228 = vmatprep.subr.mxu0 0.0
    %229 = vmatpush1.msra.mxu0 %v93
    %230 = vmatprep.subr.mxu0 0.0
    %231 = vmatpush1.msra.mxu0 %v94
    %232 = vmatprep.subr.mxu0 0.0
    %233 = vmatpush1.msra.mxu0 %v95
    %234 = vmatprep.subr.mxu0 0.0
    %235 = vmatpush1.msra.mxu0 %v96
    %236 = vmatprep.subr.mxu0 0.0
    %237 = vmatpush1.msra.mxu0 %v97
    %238 = vmatprep.subr.mxu0 0.0
    %239 = vmatpush1.msra.mxu0 %v98
    %240 = vmatprep.subr.mxu0 0.0
    %241 = vmatpush1.msra.mxu0 %v99
    %242 = vmatprep.subr.mxu0 0.0
    %243 = vmatpush1.msra.mxu0 %v100
    %244 = vmatprep.subr.mxu0 0.0
    %245 = vmatpush1.msra.mxu0 %v101
    %246 = vmatprep.subr.mxu0 0.0
    %247 = vmatpush1.msra.mxu0 %v102
    %248 = vmatprep.subr.mxu0 0.0
    %249 = vmatpush1.msra.mxu0 %v103
    %250 = vmatprep.subr.mxu0 0.0
    %251 = vmatpush1.msra.mxu0 %v104
    %252 = vmatprep.subr.mxu0 0.0
    %253 = vmatpush1.msra.mxu0 %v105
    %254 = vmatprep.subr.mxu0 0.0
    %255 = vmatpush1.msra.mxu0 %v106
    %256 = vmatprep.subr.mxu0 0.0
    %257 = vmatpush1.msra.mxu0 %v107
    %258 = vmatprep.subr.mxu0 0.0
    %259 = vmatpush1.msra.mxu0 %v108
    %260 = vmatprep.subr.mxu0 0.0
    %261 = vmatpush1.msra.mxu0 %v109
    %262 = vmatprep.subr.mxu0 0.0
    %263 = vmatpush1.msra.mxu0 %v110
    %264 = vmatprep.mubr.f32.mxu0 %v125
    %265 = vmatmul.mubr.f32.gmra.mrb[0].mxu0 %v124
    %v266 = vpop.f32.mrb[0].mxu0
    %v267 = vadd.f32 %v197, %v266
    %v268 = vpop.f32.mrb[0].mxu0
    %269 = vdwg.mxu0
    %vm270 = vcmask 23552
    %271 = vst.msk [vmem:[#allocation7] sm:$0xff] %vm270, %v267
    // Predicated region
    $region22: #{global_model_forward.1} parent=1 // pred_check
      _
    $region23: #{global_model_forward.1} parent=1 // pred_check_branch
      %273 = sbr.rel (0) target = $region25
    $region24: #{global_model_forward.1} parent=1 // pred_region
      %s275 = ssub.s32 128, 64
      %276 = vsyncadd [#allocation4], %s275
      %s277 = sshll.u32 [#allocation7], 4
      %s278 = int_to_ptr.vmem [resolvable:$true] %s277
      %283 = dma.vmem_to_hbm [thread:$0]  %s278, 64, %s3, [#allocation4], 64, 64, 4
    $region25: #{global_model_forward.1} parent=1 // pred_fallthru
      _
    // Predicated region
    $region26: #{global_model_forward.1} parent=1 // pred_check
      _
    $region27: #{global_model_forward.1} parent=1 // pred_check_branch
      %285 = sbr.rel (0) target = $region29
    $region28: #{global_model_forward.1} parent=1 // pred_region
      %286 = dma.done [#allocation4], 128
    $region29: #{global_model_forward.1} parent=1 // pred_fallthru
      _
    %287 = vsyncpa [#allocation3], 1
    %288 = vsyncpa [#allocation6], 1
    %289 = vsyncpa [#allocation4], 1

</llo_original>
